<compile_context>
chip_gen: v6e
topology: v6e:2x2x1
jax: 0.10.0
libtpu: 0.0.40
codegen_flags: <defaults>
</compile_context>

<pallas_src>
import jax
import jax.numpy as jnp
from jax.experimental import pallas as pl


# ------------------------------- kernel ------------------------------------ #

def fused_forward_kernel(ids_ref, mask_ref, emb_ref, pw_ref, pb_ref,
                         w1_ref, b1_ref, w2_ref, b2_ref, out_ref):
    B, S = ids_ref.shape
    V, H = emb_ref.shape

    ids = ids_ref[...]                                    # (B, S) int32
    m = mask_ref[...]                                     # (B, S) f32

    # Masked sum of token embeddings via counts @ emb_table (MXU-friendly,
    # avoids materialising a (B, S, H) tensor in HBM).
    viota = jax.lax.broadcasted_iota(jnp.int32, (B, V), 1)
    counts = jnp.zeros((B, V), jnp.float32)
    for s in range(S):                                    # S small & static -> unrolled
        onehot = (ids[:, s:s + 1] == viota).astype(jnp.float32)
        counts = counts + onehot * m[:, s:s + 1]

    denom = jnp.maximum(jnp.sum(m, axis=1, keepdims=True), 1.0)       # (B, 1)
    pooled = jnp.dot(counts, emb_ref[...],
                     preferred_element_type=jnp.float32) / denom      # (B, H)

    # BERT pooler: tanh(x @ W + b)
    hidden = jnp.tanh(
        jnp.dot(pooled, pw_ref[...], preferred_element_type=jnp.float32)
        + pb_ref[...])                                                # (B, H)

    # ReverseLayerF == identity in fwd; dropout == identity in eval mode.
    # All 11 heads fused: concatenated first layers, block-diagonal second layers.
    h1 = jnp.tanh(
        jnp.dot(hidden, w1_ref[...], preferred_element_type=jnp.float32)
        + b1_ref[...])                                                # (B, 11*H)
    out_ref[...] = (
        jnp.dot(h1, w2_ref[...], preferred_element_type=jnp.float32)
        + b2_ref[...])                                                # (B, O_pad)


# ------------------------------- wrapper ------------------------------------ #

def _full_spec(shape):
    return pl.BlockSpec(shape, lambda i, _s=shape: (0,) * len(_s))


def fused_forward(sent_id, mask, packed):
    B, S = sent_id.shape
    V, H = packed["emb_table"].shape
    N1 = packed["w1_cat"].shape[1]
    O_pad = packed["w2_blk"].shape[1]
    return pl.pallas_call(
        fused_forward_kernel,
        out_shape=jax.ShapeDtypeStruct((B, O_pad), jnp.float32),
        grid=(1,),
        in_specs=[
            _full_spec((B, S)),
            _full_spec((B, S)),
            _full_spec((V, H)),
            _full_spec((H, H)),
            _full_spec((1, H)),
            _full_spec((H, N1)),
            _full_spec((1, N1)),
            _full_spec((N1, O_pad)),
            _full_spec((1, O_pad)),
        ],
        out_specs=_full_spec((B, O_pad)),
    )(sent_id, mask.astype(jnp.float32), packed["emb_table"],
      packed["pool_w"], packed["pool_b"],
      packed["w1_cat"], packed["b1_cat"],
      packed["w2_blk"], packed["b2_cat"])


# ------------------------ params: init + fused packing ---------------------- #

def init_params(key, vocab, H, task_out, gender_out, age_out, adv_count):
    scale = 0.05

    def lin(k, fan_in, fan_out):
        kw, kb = jax.random.split(k)
        w = jax.random.normal(kw, (fan_in, fan_out), jnp.float32) * scale
        b = jax.random.normal(kb, (1, fan_out), jnp.float32) * scale
        return w, b

    ks = jax.random.split(key, 4)
    emb_table = jax.random.normal(ks[0], (vocab, H), jnp.float32) * 0.02
    pool_w, pool_b = lin(ks[1], H, H)

    def head(k, fan_out):
        k1, k2 = jax.random.split(k)
        w1, b1 = lin(k1, H, H)
        w2, b2 = lin(k2, H, fan_out)
        return (w1, b1, w2, b2)

    task_heads = [head(jax.random.fold_in(ks[2], 0), task_out)]
    gender_heads = [head(jax.random.fold_in(ks[3], 1 + i), gender_out)
                    for i in range(adv_count)]
    age_heads = [head(jax.random.fold_in(ks[3], 1000 + i), age_out)
                 for i in range(adv_count)]
    return emb_table, pool_w, pool_b, task_heads, gender_heads, age_heads


def pack_params(emb_table, pool_w, pool_b, heads, lane_pad=128):
    """heads: ordered [task, gender_0..A-1, age_0..A-1] of (w1, b1, w2, b2).

    Builds: w1_cat (H, n*H), b1_cat (1, n*H), block-diagonal w2_blk
    (n*H, O_pad), b2_cat (1, O_pad). O_pad is a multiple of 128 lanes so the
    single output store is lane-dense; extra columns are zeros and sliced off
    in the wrapper. Done once at parameter-prep time (zero runtime cost).
    """
    H = pool_w.shape[0]
    n = len(heads)
    w1_cat = jnp.concatenate([h[0] for h in heads], axis=1)
    b1_cat = jnp.concatenate([h[1] for h in heads], axis=1)
    o_sizes = [h[2].shape[1] for h in heads]
    total_o = sum(o_sizes)
    o_pad = ((total_o + lane_pad - 1) // lane_pad) * lane_pad
    w2_blk = jnp.zeros((n * H, o_pad), jnp.float32)
    b2_cat = jnp.zeros((1, o_pad), jnp.float32)
    off = 0
    for i, (_, _, w2, b2) in enumerate(heads):
        o = w2.shape[1]
        w2_blk = w2_blk.at[i * H:(i + 1) * H, off:off + o].set(w2)
        b2_cat = b2_cat.at[:, off:off + o].set(b2)
        off += o
    return {
        "emb_table": emb_table, "pool_w": pool_w, "pool_b": pool_b,
        "w1_cat": w1_cat, "b1_cat": b1_cat,
        "w2_blk": w2_blk, "b2_cat": b2_cat,
    }


# ------------------------------- forward ------------------------------------ #

def bert_adv_net_forward(packed, sent_id, mask,
                         task_out, gender_out, age_out, adv_count):
    out = fused_forward(sent_id, mask, packed)            # (B, O_pad) single slab
    task_res = out[:, :task_out]
    g0 = task_out
    adv_gender = [out[:, g0 + i * gender_out: g0 + (i + 1) * gender_out]
                  for i in range(adv_count)]
    a0 = g0 + adv_count * gender_out
    adv_age = [out[:, a0 + i * age_out: a0 + (i + 1) * age_out]
               for i in range(adv_count)]
    return task_res, adv_gender, adv_age


# ----------------------------- pure-JAX reference --------------------------- #

def reference_forward(emb_table, pool_w, pool_b, heads, sent_id, mask):
    m = mask.astype(jnp.float32)
    emb = emb_table[sent_id]                                          # (B, S, H)
    pooled = (emb * m[:, :, None]).sum(1) / jnp.maximum(
        m.sum(1, keepdims=True), 1.0)
    hidden = jnp.tanh(pooled @ pool_w + pool_b)
    outs = []
    for (w1, b1, w2, b2) in heads:
        h = jnp.tanh(hidden @ w1 + b1)
        outs.append(h @ w2 + b2)
    return outs


# --------------------------------- main -------------------------------------- #

if __name__ == "__main__":
    B, S, H, V = 2, 8, 32, 100
    task_out, gender_out, age_out, adv_count = 3, 2, 4, 5

    key = jax.random.PRNGKey(0)
    k_param, k_ids = jax.random.split(key)

    emb_table, pool_w, pool_b, task_heads, gender_heads, age_heads = init_params(
        k_param, V, H, task_out, gender_out, age_out, adv_count)
    heads = task_heads + gender_heads + age_heads           # fixed ordering
    packed = pack_params(emb_table, pool_w, pool_b, heads)

    sent_id = jax.random.randint(k_ids, (B, S), 0, V, dtype=jnp.int32)
    lengths = jnp.array([[S], [S - 2]], dtype=jnp.int32)
    mask = (jnp.arange(S)[None, :] < lengths).astype(jnp.float32)    # (B, S)

    task_res, adv_gender, adv_age = bert_adv_net_forward(
        packed, sent_id, mask, task_out, gender_out, age_out, adv_count)

    jax.block_until_ready(task_res)
    for a in adv_gender:
        jax.block_until_ready(a)
    for a in adv_age:
        jax.block_until_ready(a)

    # shape checks
    assert task_res.shape == (B, task_out)
    assert len(adv_gender) == adv_count and adv_gender[0].shape == (B, gender_out)
    assert len(adv_age) == adv_count and adv_age[0].shape == (B, age_out)

    # numerical sanity check against a pure-JAX reference
    ref_outs = reference_forward(emb_table, pool_w, pool_b, heads, sent_id, mask)
    got_outs = [task_res] + adv_gender + adv_age
    for got, ref in zip(got_outs, ref_outs):
        assert jnp.allclose(got, ref, atol=5e-3, rtol=5e-3), (
            float(jnp.max(jnp.abs(got - ref))))

    print("KERNEL_OK")
</pallas_src>

<mosaic_0001>
module attributes {stable_mosaic.version = 11 : i64} {
  func.func @fused_forward_kernel(%arg0: i32, %arg1: memref<2x8xi32, #tpu.memory_space<vmem>>, %arg2: memref<2x8xf32, #tpu.memory_space<vmem>>, %arg3: memref<100x32xf32, #tpu.memory_space<vmem>>, %arg4: memref<32x32xf32, #tpu.memory_space<vmem>>, %arg5: memref<1x32xf32, #tpu.memory_space<vmem>>, %arg6: memref<32x352xf32, #tpu.memory_space<vmem>>, %arg7: memref<1x352xf32, #tpu.memory_space<vmem>>, %arg8: memref<352x128xf32, #tpu.memory_space<vmem>>, %arg9: memref<1x128xf32, #tpu.memory_space<vmem>>, %arg10: memref<2x128xf32, #tpu.memory_space<vmem>>) attributes {dimension_semantics = [#tpu.dimension_semantics<arbitrary>], iteration_bounds = array<i64: 1>, scalar_prefetch = 0 : i64, scratch_operands = 0 : i64, tpu.core_type = #tpu.core_type<tc>, window_params = [{pipeline_mode = #tpu.pipeline_mode<synchronous>, transform_indices = @transform_0, window_bounds = array<i64: 2, 8>}, {pipeline_mode = #tpu.pipeline_mode<synchronous>, transform_indices = @transform_1, window_bounds = array<i64: 2, 8>}, {pipeline_mode = #tpu.pipeline_mode<synchronous>, transform_indices = @transform_2, window_bounds = array<i64: 100, 32>}, {pipeline_mode = #tpu.pipeline_mode<synchronous>, transform_indices = @transform_3, window_bounds = array<i64: 32, 32>}, {pipeline_mode = #tpu.pipeline_mode<synchronous>, transform_indices = @transform_4, window_bounds = array<i64: 1, 32>}, {pipeline_mode = #tpu.pipeline_mode<synchronous>, transform_indices = @transform_5, window_bounds = array<i64: 32, 352>}, {pipeline_mode = #tpu.pipeline_mode<synchronous>, transform_indices = @transform_6, window_bounds = array<i64: 1, 352>}, {pipeline_mode = #tpu.pipeline_mode<synchronous>, transform_indices = @transform_7, window_bounds = array<i64: 352, 128>}, {pipeline_mode = #tpu.pipeline_mode<synchronous>, transform_indices = @transform_8, window_bounds = array<i64: 1, 128>}, {pipeline_mode = #tpu.pipeline_mode<synchronous>, transform_indices = @transform_9, window_bounds = array<i64: 2, 128>}]} {
    %c0 = arith.constant 0 : index
    %c0_0 = arith.constant 0 : index
    %0 = vector.load %arg1[%c0, %c0_0] : memref<2x8xi32, #tpu.memory_space<vmem>>, vector<2x8xi32>
    %c0_1 = arith.constant 0 : index
    %c0_2 = arith.constant 0 : index
    %1 = vector.load %arg2[%c0_1, %c0_2] : memref<2x8xf32, #tpu.memory_space<vmem>>, vector<2x8xf32>
    %2 = tpu.iota {dimensions = array<i32: 1>} : vector<2x100xi32>
    %cst = arith.constant 0.000000e+00 : f32
    %3 = vector.broadcast %cst : f32 to vector<2x100xf32>
    %4 = vector.extract_strided_slice %0 {offsets = [0, 0], sizes = [2, 1], strides = [1, 1]} : vector<2x8xi32> to vector<2x1xi32>
    %5 = vector.broadcast %4 : vector<2x1xi32> to vector<2x100xi32>
    %6 = arith.cmpi eq, %5, %2 : vector<2x100xi32>
    %7 = arith.extui %6 : vector<2x100xi1> to vector<2x100xi32>
    %8 = arith.sitofp %7 : vector<2x100xi32> to vector<2x100xf32>
    %9 = vector.extract_strided_slice %1 {offsets = [0, 0], sizes = [2, 1], strides = [1, 1]} : vector<2x8xf32> to vector<2x1xf32>
    %10 = vector.broadcast %9 : vector<2x1xf32> to vector<2x100xf32>
    %11 = arith.mulf %8, %10 : vector<2x100xf32>
    %12 = arith.addf %3, %11 : vector<2x100xf32>
    %13 = vector.extract_strided_slice %0 {offsets = [0, 1], sizes = [2, 1], strides = [1, 1]} : vector<2x8xi32> to vector<2x1xi32>
    %14 = vector.broadcast %13 : vector<2x1xi32> to vector<2x100xi32>
    %15 = arith.cmpi eq, %14, %2 : vector<2x100xi32>
    %16 = arith.extui %15 : vector<2x100xi1> to vector<2x100xi32>
    %17 = arith.sitofp %16 : vector<2x100xi32> to vector<2x100xf32>
    %18 = vector.extract_strided_slice %1 {offsets = [0, 1], sizes = [2, 1], strides = [1, 1]} : vector<2x8xf32> to vector<2x1xf32>
    %19 = vector.broadcast %18 : vector<2x1xf32> to vector<2x100xf32>
    %20 = arith.mulf %17, %19 : vector<2x100xf32>
    %21 = arith.addf %12, %20 : vector<2x100xf32>
    %22 = vector.extract_strided_slice %0 {offsets = [0, 2], sizes = [2, 1], strides = [1, 1]} : vector<2x8xi32> to vector<2x1xi32>
    %23 = vector.broadcast %22 : vector<2x1xi32> to vector<2x100xi32>
    %24 = arith.cmpi eq, %23, %2 : vector<2x100xi32>
    %25 = arith.extui %24 : vector<2x100xi1> to vector<2x100xi32>
    %26 = arith.sitofp %25 : vector<2x100xi32> to vector<2x100xf32>
    %27 = vector.extract_strided_slice %1 {offsets = [0, 2], sizes = [2, 1], strides = [1, 1]} : vector<2x8xf32> to vector<2x1xf32>
    %28 = vector.broadcast %27 : vector<2x1xf32> to vector<2x100xf32>
    %29 = arith.mulf %26, %28 : vector<2x100xf32>
    %30 = arith.addf %21, %29 : vector<2x100xf32>
    %31 = vector.extract_strided_slice %0 {offsets = [0, 3], sizes = [2, 1], strides = [1, 1]} : vector<2x8xi32> to vector<2x1xi32>
    %32 = vector.broadcast %31 : vector<2x1xi32> to vector<2x100xi32>
    %33 = arith.cmpi eq, %32, %2 : vector<2x100xi32>
    %34 = arith.extui %33 : vector<2x100xi1> to vector<2x100xi32>
    %35 = arith.sitofp %34 : vector<2x100xi32> to vector<2x100xf32>
    %36 = vector.extract_strided_slice %1 {offsets = [0, 3], sizes = [2, 1], strides = [1, 1]} : vector<2x8xf32> to vector<2x1xf32>
    %37 = vector.broadcast %36 : vector<2x1xf32> to vector<2x100xf32>
    %38 = arith.mulf %35, %37 : vector<2x100xf32>
    %39 = arith.addf %30, %38 : vector<2x100xf32>
    %40 = vector.extract_strided_slice %0 {offsets = [0, 4], sizes = [2, 1], strides = [1, 1]} : vector<2x8xi32> to vector<2x1xi32>
    %41 = vector.broadcast %40 : vector<2x1xi32> to vector<2x100xi32>
    %42 = arith.cmpi eq, %41, %2 : vector<2x100xi32>
    %43 = arith.extui %42 : vector<2x100xi1> to vector<2x100xi32>
    %44 = arith.sitofp %43 : vector<2x100xi32> to vector<2x100xf32>
    %45 = vector.extract_strided_slice %1 {offsets = [0, 4], sizes = [2, 1], strides = [1, 1]} : vector<2x8xf32> to vector<2x1xf32>
    %46 = vector.broadcast %45 : vector<2x1xf32> to vector<2x100xf32>
    %47 = arith.mulf %44, %46 : vector<2x100xf32>
    %48 = arith.addf %39, %47 : vector<2x100xf32>
    %49 = vector.extract_strided_slice %0 {offsets = [0, 5], sizes = [2, 1], strides = [1, 1]} : vector<2x8xi32> to vector<2x1xi32>
    %50 = vector.broadcast %49 : vector<2x1xi32> to vector<2x100xi32>
    %51 = arith.cmpi eq, %50, %2 : vector<2x100xi32>
    %52 = arith.extui %51 : vector<2x100xi1> to vector<2x100xi32>
    %53 = arith.sitofp %52 : vector<2x100xi32> to vector<2x100xf32>
    %54 = vector.extract_strided_slice %1 {offsets = [0, 5], sizes = [2, 1], strides = [1, 1]} : vector<2x8xf32> to vector<2x1xf32>
    %55 = vector.broadcast %54 : vector<2x1xf32> to vector<2x100xf32>
    %56 = arith.mulf %53, %55 : vector<2x100xf32>
    %57 = arith.addf %48, %56 : vector<2x100xf32>
    %58 = vector.extract_strided_slice %0 {offsets = [0, 6], sizes = [2, 1], strides = [1, 1]} : vector<2x8xi32> to vector<2x1xi32>
    %59 = vector.broadcast %58 : vector<2x1xi32> to vector<2x100xi32>
    %60 = arith.cmpi eq, %59, %2 : vector<2x100xi32>
    %61 = arith.extui %60 : vector<2x100xi1> to vector<2x100xi32>
    %62 = arith.sitofp %61 : vector<2x100xi32> to vector<2x100xf32>
    %63 = vector.extract_strided_slice %1 {offsets = [0, 6], sizes = [2, 1], strides = [1, 1]} : vector<2x8xf32> to vector<2x1xf32>
    %64 = vector.broadcast %63 : vector<2x1xf32> to vector<2x100xf32>
    %65 = arith.mulf %62, %64 : vector<2x100xf32>
    %66 = arith.addf %57, %65 : vector<2x100xf32>
    %67 = vector.extract_strided_slice %0 {offsets = [0, 7], sizes = [2, 1], strides = [1, 1]} : vector<2x8xi32> to vector<2x1xi32>
    %68 = vector.broadcast %67 : vector<2x1xi32> to vector<2x100xi32>
    %69 = arith.cmpi eq, %68, %2 : vector<2x100xi32>
    %70 = arith.extui %69 : vector<2x100xi1> to vector<2x100xi32>
    %71 = arith.sitofp %70 : vector<2x100xi32> to vector<2x100xf32>
    %72 = vector.extract_strided_slice %1 {offsets = [0, 7], sizes = [2, 1], strides = [1, 1]} : vector<2x8xf32> to vector<2x1xf32>
    %73 = vector.broadcast %72 : vector<2x1xf32> to vector<2x100xf32>
    %74 = arith.mulf %71, %73 : vector<2x100xf32>
    %75 = arith.addf %66, %74 : vector<2x100xf32>
    %cst_3 = arith.constant dense<0.000000e+00> : vector<2xf32>
    %76 = vector.multi_reduction <add>, %1, %cst_3 [1] : vector<2x8xf32> to vector<2xf32>
    %77 = vector.shape_cast %76 : vector<2xf32> to vector<2x1xf32>
    %cst_4 = arith.constant 1.000000e+00 : f32
    %78 = vector.broadcast %cst_4 : f32 to vector<2x1xf32>
    %79 = arith.maximumf %77, %78 : vector<2x1xf32>
    %c0_5 = arith.constant 0 : index
    %c0_6 = arith.constant 0 : index
    %80 = vector.load %arg3[%c0_5, %c0_6] : memref<100x32xf32, #tpu.memory_space<vmem>>, vector<100x32xf32>
    %cst_7 = arith.constant dense<0.000000e+00> : vector<2x32xf32>
    %81 = tpu.matmul %75, %80, %cst_7 {dimension_numbers = #tpu.dot_dimension_numbers<[1], [0], [0], [1], [0, 0, 1, 1], [], []>} : vector<2x100xf32>, vector<100x32xf32>, vector<2x32xf32> -> vector<2x32xf32>
    %82 = vector.broadcast %79 : vector<2x1xf32> to vector<2x32xf32>
    %83 = arith.divf %81, %82 : vector<2x32xf32>
    %c0_8 = arith.constant 0 : index
    %c0_9 = arith.constant 0 : index
    %84 = vector.load %arg4[%c0_8, %c0_9] : memref<32x32xf32, #tpu.memory_space<vmem>>, vector<32x32xf32>
    %cst_10 = arith.constant dense<0.000000e+00> : vector<2x32xf32>
    %85 = tpu.matmul %83, %84, %cst_10 {dimension_numbers = #tpu.dot_dimension_numbers<[1], [0], [0], [1], [0, 0, 1, 1], [], []>} : vector<2x32xf32>, vector<32x32xf32>, vector<2x32xf32> -> vector<2x32xf32>
    %c0_11 = arith.constant 0 : index
    %c0_12 = arith.constant 0 : index
    %86 = vector.load %arg5[%c0_11, %c0_12] : memref<1x32xf32, #tpu.memory_space<vmem>>, vector<1x32xf32>
    %87 = vector.broadcast %86 : vector<1x32xf32> to vector<2x32xf32>
    %88 = arith.addf %85, %87 : vector<2x32xf32>
    %89 = math.tanh %88 : vector<2x32xf32>
    %c0_13 = arith.constant 0 : index
    %c0_14 = arith.constant 0 : index
    %90 = vector.load %arg6[%c0_13, %c0_14] : memref<32x352xf32, #tpu.memory_space<vmem>>, vector<32x352xf32>
    %cst_15 = arith.constant dense<0.000000e+00> : vector<2x352xf32>
    %91 = tpu.matmul %89, %90, %cst_15 {dimension_numbers = #tpu.dot_dimension_numbers<[1], [0], [0], [1], [0, 0, 1, 1], [], []>} : vector<2x32xf32>, vector<32x352xf32>, vector<2x352xf32> -> vector<2x352xf32>
    %c0_16 = arith.constant 0 : index
    %c0_17 = arith.constant 0 : index
    %92 = vector.load %arg7[%c0_16, %c0_17] : memref<1x352xf32, #tpu.memory_space<vmem>>, vector<1x352xf32>
    %93 = vector.broadcast %92 : vector<1x352xf32> to vector<2x352xf32>
    %94 = arith.addf %91, %93 : vector<2x352xf32>
    %95 = math.tanh %94 : vector<2x352xf32>
    %c0_18 = arith.constant 0 : index
    %c0_19 = arith.constant 0 : index
    %96 = vector.load %arg8[%c0_18, %c0_19] : memref<352x128xf32, #tpu.memory_space<vmem>>, vector<352x128xf32>
    %cst_20 = arith.constant dense<0.000000e+00> : vector<2x128xf32>
    %97 = tpu.matmul %95, %96, %cst_20 {dimension_numbers = #tpu.dot_dimension_numbers<[1], [0], [0], [1], [0, 0, 1, 1], [], []>} : vector<2x352xf32>, vector<352x128xf32>, vector<2x128xf32> -> vector<2x128xf32>
    %c0_21 = arith.constant 0 : index
    %c0_22 = arith.constant 0 : index
    %98 = vector.load %arg9[%c0_21, %c0_22] : memref<1x128xf32, #tpu.memory_space<vmem>>, vector<1x128xf32>
    %99 = vector.broadcast %98 : vector<1x128xf32> to vector<2x128xf32>
    %100 = arith.addf %97, %99 : vector<2x128xf32>
    %c0_23 = arith.constant 0 : index
    %c0_24 = arith.constant 0 : index
    %101 = vector.load %arg10[%c0_23, %c0_24] : memref<2x128xf32, #tpu.memory_space<vmem>>, vector<2x128xf32>
    tpu.vector_store %arg10[%c0_23, %c0_24], %100 {strides = array<i32>} : memref<2x128xf32, #tpu.memory_space<vmem>>, vector<2x128xf32>,
    return
  }
  func.func @transform_0(%arg0: i32) -> (i32, i32) {
    %c0_i32 = arith.constant 0 : i32
    %c0_i32_0 = arith.constant 0 : i32
    %c0_i32_1 = arith.constant 0 : i32
    return %c0_i32, %c0_i32_0 : i32, i32
  }
  func.func @transform_1(%arg0: i32) -> (i32, i32) {
    %c0_i32 = arith.constant 0 : i32
    %c0_i32_0 = arith.constant 0 : i32
    %c0_i32_1 = arith.constant 0 : i32
    return %c0_i32, %c0_i32_0 : i32, i32
  }
  func.func @transform_2(%arg0: i32) -> (i32, i32) {
    %c0_i32 = arith.constant 0 : i32
    %c0_i32_0 = arith.constant 0 : i32
    %c0_i32_1 = arith.constant 0 : i32
    return %c0_i32, %c0_i32_0 : i32, i32
  }
  func.func @transform_3(%arg0: i32) -> (i32, i32) {
    %c0_i32 = arith.constant 0 : i32
    %c0_i32_0 = arith.constant 0 : i32
    %c0_i32_1 = arith.constant 0 : i32
    return %c0_i32, %c0_i32_0 : i32, i32
  }
  func.func @transform_4(%arg0: i32) -> (i32, i32) {
    %c0_i32 = arith.constant 0 : i32
    %c0_i32_0 = arith.constant 0 : i32
    %c0_i32_1 = arith.constant 0 : i32
    return %c0_i32, %c0_i32_0 : i32, i32
  }
  func.func @transform_5(%arg0: i32) -> (i32, i32) {
    %c0_i32 = arith.constant 0 : i32
    %c0_i32_0 = arith.constant 0 : i32
    %c0_i32_1 = arith.constant 0 : i32
    return %c0_i32, %c0_i32_0 : i32, i32
  }
  func.func @transform_6(%arg0: i32) -> (i32, i32) {
    %c0_i32 = arith.constant 0 : i32
    %c0_i32_0 = arith.constant 0 : i32
    %c0_i32_1 = arith.constant 0 : i32
    return %c0_i32, %c0_i32_0 : i32, i32
  }
  func.func @transform_7(%arg0: i32) -> (i32, i32) {
    %c0_i32 = arith.constant 0 : i32
    %c0_i32_0 = arith.constant 0 : i32
    %c0_i32_1 = arith.constant 0 : i32
    return %c0_i32, %c0_i32_0 : i32, i32
  }
  func.func @transform_8(%arg0: i32) -> (i32, i32) {
    %c0_i32 = arith.constant 0 : i32
    %c0_i32_0 = arith.constant 0 : i32
    %c0_i32_1 = arith.constant 0 : i32
    return %c0_i32, %c0_i32_0 : i32, i32
  }
  func.func @transform_9(%arg0: i32) -> (i32, i32) {
    %c0_i32 = arith.constant 0 : i32
    %c0_i32_0 = arith.constant 0 : i32
    %c0_i32_1 = arith.constant 0 : i32
    return %c0_i32, %c0_i32_0 : i32, i32
  }
}

</mosaic_0001>

<llo_original>
// kernel: tpu_custom_call.1
$region0: #{tpu_custom_call.1}
  #allocation0 [shape = 'u32[]', space=smem, size = 0x4, offset = 0x4, fixed_abs, tag = 'smem constant byte address 0x4 - core index']
  #allocation1 [shape = 'u32[144,128]{1,0:T(1,128)}', space=vmem, size = 0x12000, scoped, tag = 'internal scratch']
  %s0 = inlined_call_operand.vmem [shape: s32[2,8], index: 0, kind: input, shape index: {}]
  %s1 = inlined_call_operand.vmem [shape: f32[2,8], index: 1, kind: input, shape index: {}]
  %s2 = inlined_call_operand.vmem [shape: f32[100,32], index: 2, kind: input, shape index: {}]
  %s3 = inlined_call_operand.vmem [shape: f32[32,32], index: 3, kind: input, shape index: {}]
  %s4 = inlined_call_operand.vmem [shape: f32[1,32], index: 4, kind: input, shape index: {}]
  %s5 = inlined_call_operand.vmem [shape: f32[32,352], index: 5, kind: input, shape index: {}]
  %s6 = inlined_call_operand.vmem [shape: f32[1,352], index: 6, kind: input, shape index: {}]
  %s7 = inlined_call_operand.hbm [shape: f32[352,128], index: 7, kind: input, shape index: {}]
  %s8 = inlined_call_operand.vmem [shape: f32[1,128], index: 8, kind: input, shape index: {}]
  %s9 = inlined_call_operand.hbm [shape: f32[2,128], index: 9, kind: output, shape index: {}]
  %s10 = sld [smem:[#allocation0]]
  $region50: #{tpu_custom_call.1} parent=0
    _
  %s12 = ssub.s32 1, %s10
  %s13 = scalar_select 0, %s12, %s10
  $region1: #{tpu_custom_call.1} parent=0
    #allocation2 [shape = 'u8[180224]{0}', space=vmem, size = 0x2c000, scoped, tag = 'input window, operand 7, single buffered']
    #allocation3 [shape = 's32[1]{0}', space=sflag, size = 0x4, scoped, tag = 'scoped memory for tpu_custom_call.1']
    #allocation4 [shape = 's32[1]{0}', space=sflag, size = 0x4, scoped, tag = 'scoped memory for tpu_custom_call.1']
    #allocation5 [shape = 'u8[1024]{0}', space=vmem, size = 0x400, scoped, tag = 'output window, operand 0, single buffered']
    %14 = vsyncpa [#allocation3], 0
    %15 = vsyncpa [#allocation4], 0
    // Predicated region
    $region2: #{tpu_custom_call.1} parent=1 // pred_check
      _
    $region3: #{tpu_custom_call.1} parent=1 // pred_check_branch
      %17 = sbr.rel (0) target = $region5
    $region4: #{tpu_custom_call.1} parent=1 // pred_region
      _
    $region5: #{tpu_custom_call.1} parent=1 // pred_fallthru
      _
    // Predicated region
    $region6: #{tpu_custom_call.1} parent=1 // pred_check
      _
    $region7: #{tpu_custom_call.1} parent=1 // pred_check_branch
      %19 = sbr.rel (0) target = $region9
    $region8: #{tpu_custom_call.1} parent=1 // pred_region
      _
    $region9: #{tpu_custom_call.1} parent=1 // pred_fallthru
      _
    // Predicated region
    $region10: #{tpu_custom_call.1} parent=1 // pred_check
      _
    $region11: #{tpu_custom_call.1} parent=1 // pred_check_branch
      %21 = sbr.rel (0) target = $region13
    $region12: #{tpu_custom_call.1} parent=1 // pred_region
      _
    $region13: #{tpu_custom_call.1} parent=1 // pred_fallthru
      _
    // Predicated region
    $region14: #{tpu_custom_call.1} parent=1 // pred_check
      _
    $region15: #{tpu_custom_call.1} parent=1 // pred_check_branch
      %23 = sbr.rel (0) target = $region17
    $region16: #{tpu_custom_call.1} parent=1 // pred_region
      _
    $region17: #{tpu_custom_call.1} parent=1 // pred_fallthru
      _
    // Predicated region
    $region18: #{tpu_custom_call.1} parent=1 // pred_check
      _
    $region19: #{tpu_custom_call.1} parent=1 // pred_check_branch
      %25 = sbr.rel (0) target = $region21
    $region20: #{tpu_custom_call.1} parent=1 // pred_region
      _
    $region21: #{tpu_custom_call.1} parent=1 // pred_fallthru
      _
    // Predicated region
    $region22: #{tpu_custom_call.1} parent=1 // pred_check
      _
    $region23: #{tpu_custom_call.1} parent=1 // pred_check_branch
      %27 = sbr.rel (0) target = $region25
    $region24: #{tpu_custom_call.1} parent=1 // pred_region
      _
    $region25: #{tpu_custom_call.1} parent=1 // pred_fallthru
      _
    // Predicated region
    $region26: #{tpu_custom_call.1} parent=1 // pred_check
      _
    $region27: #{tpu_custom_call.1} parent=1 // pred_check_branch
      %29 = sbr.rel (0) target = $region29
    $region28: #{tpu_custom_call.1} parent=1 // pred_region
      _
    $region29: #{tpu_custom_call.1} parent=1 // pred_fallthru
      _
    // Predicated region
    $region30: #{tpu_custom_call.1} parent=1 // pred_check
      _
    $region31: #{tpu_custom_call.1} parent=1 // pred_check_branch
      %31 = sbr.rel (0) target = $region33
    $region32: #{tpu_custom_call.1} parent=1 // pred_region
      %s33 = ssub.s32 5632, 5632
      %34 = vsyncadd [#allocation3], %s33
      %s35 = sshll.u32 [#allocation2], 4
      %s36 = int_to_ptr.vmem [resolvable:$true] %s35
      %41 = dma.hbm_to_vmem [thread:$0]  %s7, 5632, %s36, [#allocation3], 128, 128, 8
    $region33: #{tpu_custom_call.1} parent=1 // pred_fallthru
      _
    // Predicated region
    $region34: #{tpu_custom_call.1} parent=1 // pred_check
      _
    $region35: #{tpu_custom_call.1} parent=1 // pred_check_branch
      %43 = sbr.rel (0) target = $region37
    $region36: #{tpu_custom_call.1} parent=1 // pred_region
      _
    $region37: #{tpu_custom_call.1} parent=1 // pred_fallthru
      _
    // Predicated region
    $region38: #{tpu_custom_call.1} parent=1 // pred_check
      _
    $region39: #{tpu_custom_call.1} parent=1 // pred_check_branch
      %45 = sbr.rel (0) target = $region41
    $region40: #{tpu_custom_call.1} parent=1 // pred_region
      %46 = dma.done [#allocation3], 5632
    $region41: #{tpu_custom_call.1} parent=1 // pred_fallthru
      _
    %v47 = vld [vmem:[%s0] sm:$0x3]
    %v48 = vld [vmem:[%s1] sm:$0x3]
    %v49 = vlaneseq
    %v50 = vand.u32 %v49, 127
    %51 = vset.pattern.permute.xlu0 0
    %52 = vperm.xlu0 %51, %v47
    %v53 = vpop.permute.xlu0 %52
    %vm54 = vcmp.eq.s32.totalorder %v53, %v50
    %v55 = vsel %vm54, 1, 0
    %v56 = vcvt.s32.f32 %v55
    %58 = vset.pattern.permute.xlu0 0
    %59 = vperm.xlu0 %58, %v48
    %v60 = vpop.permute.xlu0 %59
    %v62 = vmul.f32 %v56, %v60
    %v63 = vadd.f32 %v62, 0.0
    %64 = vset.pattern.permute.xlu0 1
    %65 = vperm.xlu0 %64, %v47
    %v66 = vpop.permute.xlu0 %65
    %vm67 = vcmp.eq.s32.totalorder %v66, %v50
    %v68 = vsel %vm67, 1, 0
    %v69 = vcvt.s32.f32 %v68
    %70 = vset.pattern.permute.xlu0 1
    %71 = vperm.xlu0 %70, %v48
    %v72 = vpop.permute.xlu0 %71
    %v74 = vmul.f32 %v69, %v72
    %v75 = vadd.f32 %v63, %v74
    %76 = vset.pattern.permute.xlu0 2
    %77 = vperm.xlu0 %76, %v47
    %v78 = vpop.permute.xlu0 %77
    %vm79 = vcmp.eq.s32.totalorder %v78, %v50
    %v80 = vsel %vm79, 1, 0
    %v81 = vcvt.s32.f32 %v80
    %82 = vset.pattern.permute.xlu0 2
    %83 = vperm.xlu0 %82, %v48
    %v84 = vpop.permute.xlu0 %83
    %v86 = vmul.f32 %v81, %v84
    %v87 = vadd.f32 %v75, %v86
    %88 = vset.pattern.permute.xlu0 3
    %89 = vperm.xlu0 %88, %v47
    %v90 = vpop.permute.xlu0 %89
    %vm91 = vcmp.eq.s32.totalorder %v90, %v50
    %v92 = vsel %vm91, 1, 0
    %v93 = vcvt.s32.f32 %v92
    %94 = vset.pattern.permute.xlu0 3
    %95 = vperm.xlu0 %94, %v48
    %v96 = vpop.permute.xlu0 %95
    %v98 = vmul.f32 %v93, %v96
    %v99 = vadd.f32 %v87, %v98
    %100 = vset.pattern.permute.xlu0 4
    %101 = vperm.xlu0 %100, %v47
    %v102 = vpop.permute.xlu0 %101
    %vm103 = vcmp.eq.s32.totalorder %v102, %v50
    %v104 = vsel %vm103, 1, 0
    %v105 = vcvt.s32.f32 %v104
    %106 = vset.pattern.permute.xlu0 4
    %107 = vperm.xlu0 %106, %v48
    %v108 = vpop.permute.xlu0 %107
    %v110 = vmul.f32 %v105, %v108
    %v111 = vadd.f32 %v99, %v110
    %112 = vset.pattern.permute.xlu0 5
    %113 = vperm.xlu0 %112, %v47
    %v114 = vpop.permute.xlu0 %113
    %vm115 = vcmp.eq.s32.totalorder %v114, %v50
    %v116 = vsel %vm115, 1, 0
    %v117 = vcvt.s32.f32 %v116
    %118 = vset.pattern.permute.xlu0 5
    %119 = vperm.xlu0 %118, %v48
    %v120 = vpop.permute.xlu0 %119
    %v122 = vmul.f32 %v117, %v120
    %v123 = vadd.f32 %v111, %v122
    %124 = vset.pattern.permute.xlu0 6
    %125 = vperm.xlu0 %124, %v47
    %v126 = vpop.permute.xlu0 %125
    %vm127 = vcmp.eq.s32.totalorder %v126, %v50
    %v128 = vsel %vm127, 1, 0
    %v129 = vcvt.s32.f32 %v128
    %130 = vset.pattern.permute.xlu0 6
    %131 = vperm.xlu0 %130, %v48
    %v132 = vpop.permute.xlu0 %131
    %v134 = vmul.f32 %v129, %v132
    %v135 = vadd.f32 %v123, %v134
    %136 = vset.pattern.permute.xlu0 7
    %137 = vperm.xlu0 %136, %v47
    %v138 = vpop.permute.xlu0 %137
    %vm139 = vcmp.eq.s32.totalorder %v138, %v50
    %v140 = vsel %vm139, 1, 0
    %v141 = vcvt.s32.f32 %v140
    %142 = vset.pattern.permute.xlu0 7
    %143 = vperm.xlu0 %142, %v48
    %v144 = vpop.permute.xlu0 %143
    %v146 = vmul.f32 %v141, %v144
    %v147 = vadd.f32 %v135, %v146
    %vm148 = vcmask 58368
    %v149 = vsel %vm148, %v48, 0.0
    %150 = vadd.xlane.f32.xlu0 %v149
    %v151 = vpop.xlane.xlu0 %150
    %v152 = vmax.f32 %v151, 1.0
    %v153 = vld [vmem:[%s2] sm:$0xff]
    %v154 = vld [vmem:[%s2 + $0x8] sm:$0xff]
    %v155 = vld [vmem:[%s2 + $0x10] sm:$0xff]
    %v156 = vld [vmem:[%s2 + $0x18] sm:$0xff]
    %v157 = vld [vmem:[%s2 + $0x20] sm:$0xff]
    %v158 = vld [vmem:[%s2 + $0x28] sm:$0xff]
    %v159 = vld [vmem:[%s2 + $0x30] sm:$0xff]
    %v160 = vld [vmem:[%s2 + $0x38] sm:$0xff]
    %v161 = vld [vmem:[%s2 + $0x40] sm:$0xff]
    %v162 = vld [vmem:[%s2 + $0x48] sm:$0xff]
    %v163 = vld [vmem:[%s2 + $0x50] sm:$0xff]
    %v164 = vld [vmem:[%s2 + $0x58] sm:$0xff]
    %v165 = vld [vmem:[%s2 + $0x60] sm:$0xf]
    %vm166 = vcmask 818176
    %v168 = vsel %vm166, %v147, 0
    %vm170 = vcmask 1043456
    %v172 = vsel %vm170, %v165, 0
    %174 = vmatprep.subr.mxu0 0.0
    %175 = vmatpush1.msra.mxu0 0.0
    %176 = vmatprep.subr.mxu0 0.0
    %177 = vmatpush1.msra.mxu0 0.0
    %178 = vmatprep.subr.mxu0 0.0
    %179 = vmatpush1.msra.mxu0 0.0
    %180 = vmatprep.subr.mxu0 0.0
    %181 = vmatpush1.msra.mxu0 %v172
    %182 = vmatprep.subr.mxu0 0.0
    %183 = vmatpush1.msra.mxu0 %v164
    %184 = vmatprep.subr.mxu0 0.0
    %185 = vmatpush1.msra.mxu0 %v163
    %186 = vmatprep.subr.mxu0 0.0
    %187 = vmatpush1.msra.mxu0 %v162
    %188 = vmatprep.subr.mxu0 0.0
    %189 = vmatpush1.msra.mxu0 %v161
    %190 = vmatprep.subr.mxu0 0.0
    %191 = vmatpush1.msra.mxu0 %v160
    %192 = vmatprep.subr.mxu0 0.0
    %193 = vmatpush1.msra.mxu0 %v159
    %194 = vmatprep.subr.mxu0 0.0
    %195 = vmatpush1.msra.mxu0 %v158
    %196 = vmatprep.subr.mxu0 0.0
    %197 = vmatpush1.msra.mxu0 %v157
    %198 = vmatprep.subr.mxu0 0.0
    %199 = vmatpush1.msra.mxu0 %v156
    %200 = vmatprep.subr.mxu0 0.0
    %201 = vmatpush1.msra.mxu0 %v155
    %202 = vmatprep.subr.mxu0 0.0
    %203 = vmatpush1.msra.mxu0 %v154
    %204 = vmatprep.subr.mxu0 0.0
    %205 = vmatpush1.msra.mxu0 %v153
    %206 = vmatprep.subr.mxu0 0.0
    %207 = vmatpush2.msra.mxu0 0.0
    %208 = vmatprep.subr.mxu0 0.0
    %209 = vmatpush2.msra.mxu0 0.0
    %210 = vmatprep.subr.mxu0 0.0
    %211 = vmatpush2.msra.mxu0 0.0
    %212 = vmatprep.subr.mxu0 0.0
    %213 = vmatpush2.msra.mxu0 0.0
    %214 = vmatprep.subr.mxu0 0.0
    %215 = vmatpush2.msra.mxu0 0.0
    %216 = vmatprep.subr.mxu0 0.0
    %217 = vmatpush2.msra.mxu0 0.0
    %218 = vmatprep.subr.mxu0 0.0
    %219 = vmatpush2.msra.mxu0 0.0
    %220 = vmatprep.subr.mxu0 0.0
    %221 = vmatpush2.msra.mxu0 0.0
    %222 = vmatprep.subr.mxu0 0.0
    %223 = vmatpush2.msra.mxu0 0.0
    %224 = vmatprep.subr.mxu0 0.0
    %225 = vmatpush2.msra.mxu0 0.0
    %226 = vmatprep.subr.mxu0 0.0
    %227 = vmatpush2.msra.mxu0 0.0
    %228 = vmatprep.subr.mxu0 0.0
    %229 = vmatpush2.msra.mxu0 0.0
    %230 = vmatprep.subr.mxu0 0.0
    %231 = vmatpush2.msra.mxu0 0.0
    %232 = vmatprep.subr.mxu0 0.0
    %233 = vmatpush2.msra.mxu0 0.0
    %234 = vmatprep.subr.mxu0 0.0
    %235 = vmatpush2.msra.mxu0 0.0
    %236 = vmatprep.subr.mxu0 0.0
    %237 = vmatpush2.msra.mxu0 0.0
    %238 = vmatprep.mubr.f32.mxu0 0.0
    %239 = vmatmul.mubr.f32.gmra.mxu0 %v168
    %v240 = vpop.f32.mrf.mxu0
    %v241 = vadd.f32 0.0, %v240
    %v242 = vpop.f32.mrf.mxu0
    %243 = vdwg.mxu0
    %v244 = vrcp.pop %v152
    %v245 = vmul.f32 %v241, %v244
    %v246 = vld [vmem:[%s3] sm:$0xff]
    %v247 = vld [vmem:[%s3 + $0x8] sm:$0xff]
    %v248 = vld [vmem:[%s3 + $0x10] sm:$0xff]
    %v249 = vld [vmem:[%s3 + $0x18] sm:$0xff]
    %v250 = vld [vmem:[%s4] sm:$0x1]
    %v252 = vlaneseq
    %v253 = vshrl.u32 %v252, 7
    %v254 = vsub.s32 0, %v253
    %v255 = vrot.slane %v250, %v254
    %vm257 = vcmask 261120
    %v259 = vsel %vm257, %v245, 0
    %261 = vmatprep.subr.mxu0 0.0
    %262 = vmatpush1.msra.mxu0 0.0
    %263 = vmatprep.subr.mxu0 0.0
    %264 = vmatpush1.msra.mxu0 0.0
    %265 = vmatprep.subr.mxu0 0.0
    %266 = vmatpush1.msra.mxu0 0.0
    %267 = vmatprep.subr.mxu0 0.0
    %268 = vmatpush1.msra.mxu0 0.0
    %269 = vmatprep.subr.mxu0 0.0
    %270 = vmatpush1.msra.mxu0 0.0
    %271 = vmatprep.subr.mxu0 0.0
    %272 = vmatpush1.msra.mxu0 0.0
    %273 = vmatprep.subr.mxu0 0.0
    %274 = vmatpush1.msra.mxu0 0.0
    %275 = vmatprep.subr.mxu0 0.0
    %276 = vmatpush1.msra.mxu0 0.0
    %277 = vmatprep.subr.mxu0 0.0
    %278 = vmatpush1.msra.mxu0 0.0
    %279 = vmatprep.subr.mxu0 0.0
    %280 = vmatpush1.msra.mxu0 0.0
    %281 = vmatprep.subr.mxu0 0.0
    %282 = vmatpush1.msra.mxu0 0.0
    %283 = vmatprep.subr.mxu0 0.0
    %284 = vmatpush1.msra.mxu0 0.0
    %285 = vmatprep.subr.mxu0 0.0
    %286 = vmatpush1.msra.mxu0 %v249
    %287 = vmatprep.subr.mxu0 0.0
    %288 = vmatpush1.msra.mxu0 %v248
    %289 = vmatprep.subr.mxu0 0.0
    %290 = vmatpush1.msra.mxu0 %v247
    %291 = vmatprep.subr.mxu0 0.0
    %292 = vmatpush1.msra.mxu0 %v246
    %293 = vmatprep.subr.mxu0 0.0
    %294 = vmatpush2.msra.mxu0 0.0
    %295 = vmatprep.subr.mxu0 0.0
    %296 = vmatpush2.msra.mxu0 0.0
    %297 = vmatprep.subr.mxu0 0.0
    %298 = vmatpush2.msra.mxu0 0.0
    %299 = vmatprep.subr.mxu0 0.0
    %300 = vmatpush2.msra.mxu0 0.0
    %301 = vmatprep.subr.mxu0 0.0
    %302 = vmatpush2.msra.mxu0 0.0
    %303 = vmatprep.subr.mxu0 0.0
    %304 = vmatpush2.msra.mxu0 0.0
    %305 = vmatprep.subr.mxu0 0.0
    %306 = vmatpush2.msra.mxu0 0.0
    %307 = vmatprep.subr.mxu0 0.0
    %308 = vmatpush2.msra.mxu0 0.0
    %309 = vmatprep.subr.mxu0 0.0
    %310 = vmatpush2.msra.mxu0 0.0
    %311 = vmatprep.subr.mxu0 0.0
    %312 = vmatpush2.msra.mxu0 0.0
    %313 = vmatprep.subr.mxu0 0.0
    %314 = vmatpush2.msra.mxu0 0.0
    %315 = vmatprep.subr.mxu0 0.0
    %316 = vmatpush2.msra.mxu0 0.0
    %317 = vmatprep.subr.mxu0 0.0
    %318 = vmatpush2.msra.mxu0 0.0
    %319 = vmatprep.subr.mxu0 0.0
    %320 = vmatpush2.msra.mxu0 0.0
    %321 = vmatprep.subr.mxu0 0.0
    %322 = vmatpush2.msra.mxu0 0.0
    %323 = vmatprep.subr.mxu0 0.0
    %324 = vmatpush2.msra.mxu0 0.0
    %325 = vmatprep.mubr.f32.mxu0 0.0
    %326 = vmatmul.mubr.f32.gmra.mxu0 %v259
    %v327 = vpop.f32.mrf.mxu0
    %v328 = vadd.f32 %v255, %v327
    %v329 = vpop.f32.mrf.mxu0
    %330 = vdwg.mxu0
    %v331 = vtanh.pop %v328
    %v332 = vld [vmem:[%s5] sm:$0xff]
    %v333 = vld [vmem:[%s5 + $0x8] sm:$0xff]
    %v334 = vld [vmem:[%s5 + $0x10] sm:$0xff]
    %v335 = vld [vmem:[%s5 + $0x18] sm:$0xff]
    %v336 = vld [vmem:[%s5 + $0x20] sm:$0xff]
    %v337 = vld [vmem:[%s5 + $0x28] sm:$0xff]
    %v338 = vld [vmem:[%s5 + $0x30] sm:$0xff]
    %v339 = vld [vmem:[%s5 + $0x38] sm:$0xff]
    %v340 = vld [vmem:[%s5 + $0x40] sm:$0xff]
    %v341 = vld [vmem:[%s5 + $0x48] sm:$0xff]
    %v342 = vld [vmem:[%s5 + $0x50] sm:$0xff]
    %v343 = vld [vmem:[%s5 + $0x58] sm:$0xff]
    %v344 = vld [vmem:[%s6] sm:$0x7]
    %v346 = vlaneseq
    %v347 = vshrl.u32 %v346, 7
    %v348 = vsub.s32 0, %v347
    %v349 = vrot.slane %v344, %v348
    %v350 = vlaneseq
    %v351 = vshrl.u32 %v350, 7
    %v352 = vsub.s32 1, %v351
    %v353 = vrot.slane %v344, %v352
    %v354 = vlaneseq
    %v355 = vshrl.u32 %v354, 7
    %v356 = vsub.s32 2, %v355
    %v357 = vrot.slane %v344, %v356
    %v362 = vsel %vm257, %v331, 0
    %364 = vmatprep.subr.mxu0 0.0
    %365 = vmatpush1.msra.mxu0 0.0
    %366 = vmatprep.subr.mxu0 0.0
    %367 = vmatpush1.msra.mxu0 0.0
    %368 = vmatprep.subr.mxu0 0.0
    %369 = vmatpush1.msra.mxu0 0.0
    %370 = vmatprep.subr.mxu0 0.0
    %371 = vmatpush1.msra.mxu0 0.0
    %372 = vmatprep.subr.mxu0 0.0
    %373 = vmatpush1.msra.mxu0 0.0
    %374 = vmatprep.subr.mxu0 0.0
    %375 = vmatpush1.msra.mxu0 0.0
    %376 = vmatprep.subr.mxu0 0.0
    %377 = vmatpush1.msra.mxu0 0.0
    %378 = vmatprep.subr.mxu0 0.0
    %379 = vmatpush1.msra.mxu0 0.0
    %380 = vmatprep.subr.mxu0 0.0
    %381 = vmatpush1.msra.mxu0 0.0
    %382 = vmatprep.subr.mxu0 0.0
    %383 = vmatpush1.msra.mxu0 0.0
    %384 = vmatprep.subr.mxu0 0.0
    %385 = vmatpush1.msra.mxu0 0.0
    %386 = vmatprep.subr.mxu0 0.0
    %387 = vmatpush1.msra.mxu0 0.0
    %388 = vmatprep.subr.mxu0 %v342
    %389 = vmatpush1.msra.mxu0 %v341
    %390 = vmatprep.subr.mxu0 %v339
    %391 = vmatpush1.msra.mxu0 %v338
    %392 = vmatprep.subr.mxu0 %v336
    %393 = vmatpush1.msra.mxu0 %v335
    %394 = vmatprep.subr.mxu0 %v333
    %395 = vmatpush1.msra.mxu0 %v332
    %396 = vmatprep.subr.mxu0 0.0
    %397 = vmatpush2.msra.mxu0 0.0
    %398 = vmatprep.subr.mxu0 0.0
    %399 = vmatpush2.msra.mxu0 0.0
    %400 = vmatprep.subr.mxu0 0.0
    %401 = vmatpush2.msra.mxu0 0.0
    %402 = vmatprep.subr.mxu0 0.0
    %403 = vmatpush2.msra.mxu0 0.0
    %404 = vmatprep.subr.mxu0 0.0
    %405 = vmatpush2.msra.mxu0 0.0
    %406 = vmatprep.subr.mxu0 0.0
    %407 = vmatpush2.msra.mxu0 0.0
    %408 = vmatprep.subr.mxu0 0.0
    %409 = vmatpush2.msra.mxu0 0.0
    %410 = vmatprep.subr.mxu0 0.0
    %411 = vmatpush2.msra.mxu0 0.0
    %412 = vmatprep.subr.mxu0 0.0
    %413 = vmatpush2.msra.mxu0 0.0
    %414 = vmatprep.subr.mxu0 0.0
    %415 = vmatpush2.msra.mxu0 0.0
    %416 = vmatprep.subr.mxu0 0.0
    %417 = vmatpush2.msra.mxu0 0.0
    %418 = vmatprep.subr.mxu0 0.0
    %419 = vmatpush2.msra.mxu0 0.0
    %420 = vmatprep.subr.mxu0 0.0
    %421 = vmatpush2.msra.mxu0 0.0
    %422 = vmatprep.subr.mxu0 0.0
    %423 = vmatpush2.msra.mxu0 0.0
    %424 = vmatprep.subr.mxu0 0.0
    %425 = vmatpush2.msra.mxu0 0.0
    %426 = vmatprep.subr.mxu0 0.0
    %427 = vmatpush2.msra.mxu0 0.0
    %428 = vmatprep.mubr.f32.mxu0 0.0
    %429 = vmatmul.mubr.f32.gmra.mxu0 %v362
    %v430 = vpop.f32.mrf.mxu0
    %v431 = vadd.f32 %v349, %v430
    %v432 = vpop.f32.mrf.mxu0
    %v433 = vadd.f32 %v353, %v432
    %434 = vdwg.mxu0
    %435 = vmatprep.subr.mxu0 0.0
    %436 = vmatpush1.msra.mxu0 0.0
    %437 = vmatprep.subr.mxu0 0.0
    %438 = vmatpush1.msra.mxu0 0.0
    %439 = vmatprep.subr.mxu0 0.0
    %440 = vmatpush1.msra.mxu0 0.0
    %441 = vmatprep.subr.mxu0 0.0
    %442 = vmatpush1.msra.mxu0 0.0
    %443 = vmatprep.subr.mxu0 0.0
    %444 = vmatpush1.msra.mxu0 0.0
    %445 = vmatprep.subr.mxu0 0.0
    %446 = vmatpush1.msra.mxu0 0.0
    %447 = vmatprep.subr.mxu0 0.0
    %448 = vmatpush1.msra.mxu0 0.0
    %449 = vmatprep.subr.mxu0 0.0
    %450 = vmatpush1.msra.mxu0 0.0
    %451 = vmatprep.subr.mxu0 0.0
    %452 = vmatpush1.msra.mxu0 0.0
    %453 = vmatprep.subr.mxu0 0.0
    %454 = vmatpush1.msra.mxu0 0.0
    %455 = vmatprep.subr.mxu0 0.0
    %456 = vmatpush1.msra.mxu0 0.0
    %457 = vmatprep.subr.mxu0 0.0
    %458 = vmatpush1.msra.mxu0 0.0
    %459 = vmatprep.subr.mxu0 0.0
    %460 = vmatpush1.msra.mxu0 %v343
    %461 = vmatprep.subr.mxu0 0.0
    %462 = vmatpush1.msra.mxu0 %v340
    %463 = vmatprep.subr.mxu0 0.0
    %464 = vmatpush1.msra.mxu0 %v337
    %465 = vmatprep.subr.mxu0 0.0
    %466 = vmatpush1.msra.mxu0 %v334
    %467 = vmatprep.subr.mxu0 0.0
    %468 = vmatpush2.msra.mxu0 0.0
    %469 = vmatprep.subr.mxu0 0.0
    %470 = vmatpush2.msra.mxu0 0.0
    %471 = vmatprep.subr.mxu0 0.0
    %472 = vmatpush2.msra.mxu0 0.0
    %473 = vmatprep.subr.mxu0 0.0
    %474 = vmatpush2.msra.mxu0 0.0
    %475 = vmatprep.subr.mxu0 0.0
    %476 = vmatpush2.msra.mxu0 0.0
    %477 = vmatprep.subr.mxu0 0.0
    %478 = vmatpush2.msra.mxu0 0.0
    %479 = vmatprep.subr.mxu0 0.0
    %480 = vmatpush2.msra.mxu0 0.0
    %481 = vmatprep.subr.mxu0 0.0
    %482 = vmatpush2.msra.mxu0 0.0
    %483 = vmatprep.subr.mxu0 0.0
    %484 = vmatpush2.msra.mxu0 0.0
    %485 = vmatprep.subr.mxu0 0.0
    %486 = vmatpush2.msra.mxu0 0.0
    %487 = vmatprep.subr.mxu0 0.0
    %488 = vmatpush2.msra.mxu0 0.0
    %489 = vmatprep.subr.mxu0 0.0
    %490 = vmatpush2.msra.mxu0 0.0
    %491 = vmatprep.subr.mxu0 0.0
    %492 = vmatpush2.msra.mxu0 0.0
    %493 = vmatprep.subr.mxu0 0.0
    %494 = vmatpush2.msra.mxu0 0.0
    %495 = vmatprep.subr.mxu0 0.0
    %496 = vmatpush2.msra.mxu0 0.0
    %497 = vmatprep.subr.mxu0 0.0
    %498 = vmatpush2.msra.mxu0 0.0
    %499 = vmatprep.mubr.f32.mxu0 0.0
    %500 = vmatmul.mubr.f32.gmra.mxu0 %v362
    %v501 = vpop.f32.mrf.mxu0
    %v502 = vadd.f32 %v357, %v501
    %v503 = vpop.f32.mrf.mxu0
    %504 = vdwg.mxu0
    %v505 = vtanh.pop %v431
    %v506 = vtanh.pop %v433
    %v507 = vtanh.pop %v502
    %v508 = vld [vmem:[#allocation2] sm:$0xff]
    %v509 = vld [vmem:[#allocation2 + $0x8] sm:$0xff]
    %v510 = vld [vmem:[#allocation2 + $0x10] sm:$0xff]
    %v511 = vld [vmem:[#allocation2 + $0x18] sm:$0xff]
    %v512 = vld [vmem:[#allocation2 + $0x20] sm:$0xff]
    %v513 = vld [vmem:[#allocation2 + $0x28] sm:$0xff]
    %v514 = vld [vmem:[#allocation2 + $0x30] sm:$0xff]
    %v515 = vld [vmem:[#allocation2 + $0x38] sm:$0xff]
    %v516 = vld [vmem:[#allocation2 + $0x40] sm:$0xff]
    %v517 = vld [vmem:[#allocation2 + $0x48] sm:$0xff]
    %v518 = vld [vmem:[#allocation2 + $0x50] sm:$0xff]
    %v519 = vld [vmem:[#allocation2 + $0x58] sm:$0xff]
    %v520 = vld [vmem:[#allocation2 + $0x60] sm:$0xff]
    %v521 = vld [vmem:[#allocation2 + $0x68] sm:$0xff]
    %v522 = vld [vmem:[#allocation2 + $0x70] sm:$0xff]
    %v523 = vld [vmem:[#allocation2 + $0x78] sm:$0xff]
    %v524 = vld [vmem:[#allocation2 + $0x80] sm:$0xff]
    %v525 = vld [vmem:[#allocation2 + $0x88] sm:$0xff]
    %v526 = vld [vmem:[#allocation2 + $0x90] sm:$0xff]
    %v527 = vld [vmem:[#allocation2 + $0x98] sm:$0xff]
    %v528 = vld [vmem:[#allocation2 + $0xa0] sm:$0xff]
    %v529 = vld [vmem:[#allocation2 + $0xa8] sm:$0xff]
    %v530 = vld [vmem:[#allocation2 + $0xb0] sm:$0xff]
    %v531 = vld [vmem:[#allocation2 + $0xb8] sm:$0xff]
    %v532 = vld [vmem:[#allocation2 + $0xc0] sm:$0xff]
    %v533 = vld [vmem:[#allocation2 + $0xc8] sm:$0xff]
    %v534 = vld [vmem:[#allocation2 + $0xd0] sm:$0xff]
    %v535 = vld [vmem:[#allocation2 + $0xd8] sm:$0xff]
    %v536 = vld [vmem:[#allocation2 + $0xe0] sm:$0xff]
    %v537 = vld [vmem:[#allocation2 + $0xe8] sm:$0xff]
    %v538 = vld [vmem:[#allocation2 + $0xf0] sm:$0xff]
    %v539 = vld [vmem:[#allocation2 + $0xf8] sm:$0xff]
    %v540 = vld [vmem:[#allocation2 + $0x100] sm:$0xff]
    %v541 = vld [vmem:[#allocation2 + $0x108] sm:$0xff]
    %v542 = vld [vmem:[#allocation2 + $0x110] sm:$0xff]
    %v543 = vld [vmem:[#allocation2 + $0x118] sm:$0xff]
    %v544 = vld [vmem:[#allocation2 + $0x120] sm:$0xff]
    %v545 = vld [vmem:[#allocation2 + $0x128] sm:$0xff]
    %v546 = vld [vmem:[#allocation2 + $0x130] sm:$0xff]
    %v547 = vld [vmem:[#allocation2 + $0x138] sm:$0xff]
    %v548 = vld [vmem:[#allocation2 + $0x140] sm:$0xff]
    %v549 = vld [vmem:[#allocation2 + $0x148] sm:$0xff]
    %v550 = vld [vmem:[#allocation2 + $0x150] sm:$0xff]
    %v551 = vld [vmem:[#allocation2 + $0x158] sm:$0xff]
    %v552 = vld [vmem:[%s8] sm:$0x1]
    %v554 = vlaneseq
    %v555 = vshrl.u32 %v554, 7
    %v556 = vsub.s32 0, %v555
    %v557 = vrot.slane %v552, %v556
    %vm559 = vcmask 785408
    %v561 = vsel %vm559, %v507, 0
    %563 = vmatprep.subr.mxu0 0.0
    %564 = vmatpush1.msra.mxu0 %v523
    %565 = vmatprep.subr.mxu0 0.0
    %566 = vmatpush1.msra.mxu0 %v522
    %567 = vmatprep.subr.mxu0 0.0
    %568 = vmatpush1.msra.mxu0 %v521
    %569 = vmatprep.subr.mxu0 0.0
    %570 = vmatpush1.msra.mxu0 %v520
    %571 = vmatprep.subr.mxu0 0.0
    %572 = vmatpush1.msra.mxu0 %v519
    %573 = vmatprep.subr.mxu0 0.0
    %574 = vmatpush1.msra.mxu0 %v518
    %575 = vmatprep.subr.mxu0 0.0
    %576 = vmatpush1.msra.mxu0 %v517
    %577 = vmatprep.subr.mxu0 0.0
    %578 = vmatpush1.msra.mxu0 %v516
    %579 = vmatprep.subr.mxu0 0.0
    %580 = vmatpush1.msra.mxu0 %v515
    %581 = vmatprep.subr.mxu0 0.0
    %582 = vmatpush1.msra.mxu0 %v514
    %583 = vmatprep.subr.mxu0 0.0
    %584 = vmatpush1.msra.mxu0 %v513
    %585 = vmatprep.subr.mxu0 0.0
    %586 = vmatpush1.msra.mxu0 %v512
    %587 = vmatprep.subr.mxu0 0.0
    %588 = vmatpush1.msra.mxu0 %v511
    %589 = vmatprep.subr.mxu0 0.0
    %590 = vmatpush1.msra.mxu0 %v510
    %591 = vmatprep.subr.mxu0 0.0
    %592 = vmatpush1.msra.mxu0 %v509
    %593 = vmatprep.subr.mxu0 0.0
    %594 = vmatpush1.msra.mxu0 %v508
    %595 = vmatprep.subr.mxu0 0.0
    %596 = vmatpush2.msra.mxu0 %v539
    %597 = vmatprep.subr.mxu0 0.0
    %598 = vmatpush2.msra.mxu0 %v538
    %599 = vmatprep.subr.mxu0 0.0
    %600 = vmatpush2.msra.mxu0 %v537
    %601 = vmatprep.subr.mxu0 0.0
    %602 = vmatpush2.msra.mxu0 %v536
    %603 = vmatprep.subr.mxu0 0.0
    %604 = vmatpush2.msra.mxu0 %v535
    %605 = vmatprep.subr.mxu0 0.0
    %606 = vmatpush2.msra.mxu0 %v534
    %607 = vmatprep.subr.mxu0 0.0
    %608 = vmatpush2.msra.mxu0 %v533
    %609 = vmatprep.subr.mxu0 0.0
    %610 = vmatpush2.msra.mxu0 %v532
    %611 = vmatprep.subr.mxu0 0.0
    %612 = vmatpush2.msra.mxu0 %v531
    %613 = vmatprep.subr.mxu0 0.0
    %614 = vmatpush2.msra.mxu0 %v530
    %615 = vmatprep.subr.mxu0 0.0
    %616 = vmatpush2.msra.mxu0 %v529
    %617 = vmatprep.subr.mxu0 0.0
    %618 = vmatpush2.msra.mxu0 %v528
    %619 = vmatprep.subr.mxu0 0.0
    %620 = vmatpush2.msra.mxu0 %v527
    %621 = vmatprep.subr.mxu0 0.0
    %622 = vmatpush2.msra.mxu0 %v526
    %623 = vmatprep.subr.mxu0 0.0
    %624 = vmatpush2.msra.mxu0 %v525
    %625 = vmatprep.subr.mxu0 0.0
    %626 = vmatpush2.msra.mxu0 %v524
    %627 = vmatprep.mubr.f32.mxu0 %v506
    %628 = vmatmul.mubr.f32.gmra.mxu0 %v505
    %v629 = vpop.f32.mrf.mxu0
    %v630 = vadd.f32 %v557, %v629
    %v631 = vpop.f32.mrf.mxu0
    %632 = vdwg.mxu0
    %633 = vmatprep.subr.mxu0 0.0
    %634 = vmatpush1.msra.mxu0 0.0
    %635 = vmatprep.subr.mxu0 0.0
    %636 = vmatpush1.msra.mxu0 0.0
    %637 = vmatprep.subr.mxu0 0.0
    %638 = vmatpush1.msra.mxu0 0.0
    %639 = vmatprep.subr.mxu0 0.0
    %640 = vmatpush1.msra.mxu0 0.0
    %641 = vmatprep.subr.mxu0 0.0
    %642 = vmatpush1.msra.mxu0 %v551
    %643 = vmatprep.subr.mxu0 0.0
    %644 = vmatpush1.msra.mxu0 %v550
    %645 = vmatprep.subr.mxu0 0.0
    %646 = vmatpush1.msra.mxu0 %v549
    %647 = vmatprep.subr.mxu0 0.0
    %648 = vmatpush1.msra.mxu0 %v548
    %649 = vmatprep.subr.mxu0 0.0
    %650 = vmatpush1.msra.mxu0 %v547
    %651 = vmatprep.subr.mxu0 0.0
    %652 = vmatpush1.msra.mxu0 %v546
    %653 = vmatprep.subr.mxu0 0.0
    %654 = vmatpush1.msra.mxu0 %v545
    %655 = vmatprep.subr.mxu0 0.0
    %656 = vmatpush1.msra.mxu0 %v544
    %657 = vmatprep.subr.mxu0 0.0
    %658 = vmatpush1.msra.mxu0 %v543
    %659 = vmatprep.subr.mxu0 0.0
    %660 = vmatpush1.msra.mxu0 %v542
    %661 = vmatprep.subr.mxu0 0.0
    %662 = vmatpush1.msra.mxu0 %v541
    %663 = vmatprep.subr.mxu0 0.0
    %664 = vmatpush1.msra.mxu0 %v540
    %665 = vmatprep.subr.mxu0 0.0
    %666 = vmatpush2.msra.mxu0 0.0
    %667 = vmatprep.subr.mxu0 0.0
    %668 = vmatpush2.msra.mxu0 0.0
    %669 = vmatprep.subr.mxu0 0.0
    %670 = vmatpush2.msra.mxu0 0.0
    %671 = vmatprep.subr.mxu0 0.0
    %672 = vmatpush2.msra.mxu0 0.0
    %673 = vmatprep.subr.mxu0 0.0
    %674 = vmatpush2.msra.mxu0 0.0
    %675 = vmatprep.subr.mxu0 0.0
    %676 = vmatpush2.msra.mxu0 0.0
    %677 = vmatprep.subr.mxu0 0.0
    %678 = vmatpush2.msra.mxu0 0.0
    %679 = vmatprep.subr.mxu0 0.0
    %680 = vmatpush2.msra.mxu0 0.0
    %681 = vmatprep.subr.mxu0 0.0
    %682 = vmatpush2.msra.mxu0 0.0
    %683 = vmatprep.subr.mxu0 0.0
    %684 = vmatpush2.msra.mxu0 0.0
    %685 = vmatprep.subr.mxu0 0.0
    %686 = vmatpush2.msra.mxu0 0.0
    %687 = vmatprep.subr.mxu0 0.0
    %688 = vmatpush2.msra.mxu0 0.0
    %689 = vmatprep.subr.mxu0 0.0
    %690 = vmatpush2.msra.mxu0 0.0
    %691 = vmatprep.subr.mxu0 0.0
    %692 = vmatpush2.msra.mxu0 0.0
    %693 = vmatprep.subr.mxu0 0.0
    %694 = vmatpush2.msra.mxu0 0.0
    %695 = vmatprep.subr.mxu0 0.0
    %696 = vmatpush2.msra.mxu0 0.0
    %697 = vmatprep.mubr.f32.mxu0 0.0
    %698 = vmatmul.mubr.f32.gmra.mxu0 %v561
    %v699 = vpop.f32.mrf.mxu0
    %v700 = vadd.f32 %v630, %v699
    %v701 = vpop.f32.mrf.mxu0
    %702 = vdwg.mxu0
    %703 = vst [vmem:[#allocation5] sm:$0x3] %v700
    // Predicated region
    $region42: #{tpu_custom_call.1} parent=1 // pred_check
      _
    $region43: #{tpu_custom_call.1} parent=1 // pred_check_branch
      %705 = sbr.rel (0) target = $region45
    $region44: #{tpu_custom_call.1} parent=1 // pred_region
      %s707 = ssub.s32 32, 32
      %708 = vsyncadd [#allocation4], %s707
      %s710 = sshll.u32 [#allocation5], 4
      %s711 = int_to_ptr.vmem [resolvable:$true] %s710
      %713 = dma.vmem_to_hbm [thread:$0]  %s711, 32, %s9, [#allocation4]
    $region45: #{tpu_custom_call.1} parent=1 // pred_fallthru
      _
    // Predicated region
    $region46: #{tpu_custom_call.1} parent=1 // pred_check
      _
    $region47: #{tpu_custom_call.1} parent=1 // pred_check_branch
      %715 = sbr.rel (0) target = $region49
    $region48: #{tpu_custom_call.1} parent=1 // pred_region
      %716 = dma.done [#allocation4], 32
    $region49: #{tpu_custom_call.1} parent=1 // pred_fallthru
      _
    %717 = vsyncpa [#allocation3], 1
    %718 = vsyncpa [#allocation4], 1

</llo_original>
